<compile_context>
chip_gen: v7x
topology: tpu7x:2x2x1
jax: 0.10.0
libtpu: 0.0.40
codegen_flags: <defaults>
</compile_context>

<pallas_src>
import functools

import jax
import jax.numpy as jnp
from jax.experimental import pallas as pl
from jax.experimental.pallas import tpu as pltpu

KH = KW = 4
BN_EPS = 1e-5
LRELU_SLOPE = 0.2


def _round_up(a, b):
    return ((a + b - 1) // b) * b


def _conv_stats_kernel(p_ref, w_ref, y_ref, stats_ref):
    """grid=(M_tiles, K_tiles). Accumulate the im2col matmul directly into the f32
    output tile (resident across the K axis); on the last K step emit per-M-tile
    partial sum and sum-of-squares per output channel (rows 0/1 of an 8-row slab)."""
    k = pl.program_id(1)

    @pl.when(k == 0)
    def _():
        y_ref[...] = jnp.zeros_like(y_ref)

    y_ref[...] += jnp.dot(p_ref[...], w_ref[...],
                          preferred_element_type=jnp.float32)

    @pl.when(k == pl.num_programs(1) - 1)
    def _():
        y = y_ref[...]                                    # (tm, C_pad) f32
        psum = jnp.sum(y, axis=0, keepdims=True)          # (1, C_pad)
        psq = jnp.sum(y * y, axis=0, keepdims=True)       # (1, C_pad)
        row = jax.lax.broadcasted_iota(jnp.int32, (8, y.shape[1]), 0)
        stats = jnp.where(row == 0, psum, jnp.where(row == 1, psq, 0.0))
        stats_ref[...] = stats[None, :, :]


def _bn_lrelu_kernel(y_ref, scale_ref, bias_ref, o_ref, *, slope):
    z = y_ref[...] * scale_ref[...] + bias_ref[...]
    o_ref[...] = jnp.where(z >= 0, z, slope * z).astype(o_ref.dtype)


def _im2col(x_padded, h_out, w_out, stride):
    """x_padded: (N, C, Hp, Wp) -> patches (N*Ho*Wo, C*KH*KW), K ordered (c, kh, kw)
    to match torch's weight.reshape(C_out, -1)."""
    n, c, _, _ = x_padded.shape
    cols = []
    for kh in range(KH):
        for kw in range(KW):
            cols.append(
                x_padded[:, :,
                         kh:kh + stride * (h_out - 1) + 1:stride,
                         kw:kw + stride * (w_out - 1) + 1:stride])   # (N, C, Ho, Wo)
    col = jnp.stack(cols, axis=2)                    # (N, C, KH*KW, Ho, Wo)
    col = col.reshape(n, c * KH * KW, h_out, w_out)  # K index = c*16 + kh*4 + kw
    col = jnp.transpose(col, (0, 2, 3, 1))           # (N, Ho, Wo, K)
    return col.reshape(n * h_out * w_out, c * KH * KW)


def cnn_block(x, weight, gamma, beta, stride):
    """x: (N, C_in, H, W) NCHW. weight: (C_out, C_in, 4, 4). Returns (N, C_out, Ho, Wo)."""
    n, c_in, h, w = x.shape
    c_out = weight.shape[0]
    h_out = (h + 2 - KH) // stride + 1
    w_out = (w + 2 - KW) // stride + 1

    # Reflect padding (padding_mode='reflect', pad=1) — glue done in plain JAX.
    xp = jnp.pad(x, ((0, 0), (0, 0), (1, 1), (1, 1)), mode="reflect")

    # TODO(synk): im2col is still materialized in HBM by XLA; fusing the shifted-window
    # gather into the matmul kernel would remove one ~4x-inflated HBM round trip.
    patches = _im2col(xp, h_out, w_out, stride).astype(jnp.bfloat16)        # (M, K)
    w_mat = weight.reshape(c_out, c_in * KH * KW).T.astype(jnp.bfloat16)    # (K, C_out)

    m, k = patches.shape

    # --- tiling ---
    # K: 256-deep contraction per step (full MXU depth on v6e/v7x); one step if K small.
    k_pad = _round_up(k, 128)
    if k_pad <= 256:
        tk = k_pad
    else:
        tk = 256
        k_pad = _round_up(k, 256)
    # M: fixed-size tiles -> VMEM footprint independent of M.
    tm = 512 if m >= 512 else _round_up(m, 8)
    m_pad = _round_up(m, tm)
    # C_out: pad to a lane-dense multiple of 128.
    c_pad = _round_up(c_out, 128)

    if (m_pad, k_pad) != (m, k):
        patches = jnp.pad(patches, ((0, m_pad - m), (0, k_pad - k)))
    if (k_pad, c_pad) != w_mat.shape:
        w_mat = jnp.pad(w_mat, ((0, k_pad - k), (0, c_pad - c_out)))

    m_tiles = m_pad // tm
    k_tiles = k_pad // tk

    # Pass 1: conv matmul + per-tile BN partial statistics.
    y, stats = pl.pallas_call(
        _conv_stats_kernel,
        out_shape=(jax.ShapeDtypeStruct((m_pad, c_pad), jnp.float32),
                   jax.ShapeDtypeStruct((m_tiles, 8, c_pad), jnp.float32)),
        grid_spec=pltpu.PrefetchScalarGridSpec(
            num_scalar_prefetch=0,
            grid=(m_tiles, k_tiles),
            in_specs=[
                pl.BlockSpec((tm, tk), lambda i, kk: (i, kk)),       # patches
                pl.BlockSpec((tk, c_pad), lambda i, kk: (kk, 0)),    # weights
            ],
            out_specs=[
                pl.BlockSpec((tm, c_pad), lambda i, kk: (i, 0)),     # conv result
                pl.BlockSpec((1, 8, c_pad), lambda i, kk: (i, 0, 0)),  # partial stats
            ],
        ),
        compiler_params=pltpu.CompilerParams(
            dimension_semantics=("parallel", "arbitrary")),
    )(patches, w_mat)

    # BatchNorm2d training-mode stats over all of (N, Ho, Wo).
    # Zero-padded M rows / C_out columns contribute 0 to both sums, so dividing by the
    # true M keeps the statistics exact.
    total_sum = jnp.sum(stats[:, 0, :], axis=0)
    total_sq = jnp.sum(stats[:, 1, :], axis=0)
    mean = total_sum / m
    var = jnp.maximum(total_sq / m - mean * mean, 0.0)   # biased variance

    gamma_pad = jnp.pad(gamma.astype(jnp.float32), (0, c_pad - c_out))
    beta_pad = jnp.pad(beta.astype(jnp.float32), (0, c_pad - c_out))
    inv_std = jax.lax.rsqrt(var + BN_EPS)
    scale = (gamma_pad * inv_std).reshape(1, c_pad)
    bias = (beta_pad - mean * gamma_pad * inv_std).reshape(1, c_pad)

    # Pass 2: affine normalize + LeakyReLU(0.2), tiled over M.
    out_flat = pl.pallas_call(
        functools.partial(_bn_lrelu_kernel, slope=LRELU_SLOPE),
        out_shape=jax.ShapeDtypeStruct((m_pad, c_pad), jnp.float32),
        grid_spec=pltpu.PrefetchScalarGridSpec(
            num_scalar_prefetch=0,
            grid=(m_tiles,),
            in_specs=[
                pl.BlockSpec((tm, c_pad), lambda i: (i, 0)),
                pl.BlockSpec((1, c_pad), lambda i: (0, 0)),
                pl.BlockSpec((1, c_pad), lambda i: (0, 0)),
            ],
            out_specs=pl.BlockSpec((tm, c_pad), lambda i: (i, 0)),
        ),
        compiler_params=pltpu.CompilerParams(
            dimension_semantics=("parallel",)),
    )(y, scale, bias)

    out = out_flat[:m, :c_out].reshape(n, h_out, w_out, c_out)
    return jnp.transpose(out, (0, 3, 1, 2))                # back to NCHW


def _reference(x, weight, gamma, beta, stride):
    """Pure-JAX f32 reference mirroring the PyTorch module (training-mode BN)."""
    xp = jnp.pad(x, ((0, 0), (0, 0), (1, 1), (1, 1)), mode="reflect")
    y = jax.lax.conv_general_dilated(
        xp, weight, window_strides=(stride, stride), padding="VALID",
        dimension_numbers=("NCHW", "OIHW", "NCHW"))
    mean = jnp.mean(y, axis=(0, 2, 3), keepdims=True)
    var = jnp.mean((y - mean) ** 2, axis=(0, 2, 3), keepdims=True)
    yhat = (y - mean) * jax.lax.rsqrt(var + BN_EPS)
    z = yhat * gamma.reshape(1, -1, 1, 1) + beta.reshape(1, -1, 1, 1)
    return jnp.where(z >= 0, z, LRELU_SLOPE * z)


if __name__ == "__main__":
    # Small shapes consistent with the module: NCHW input, 4x4 kernel, stride 2, pad 1.
    N, C_IN, C_OUT, H, W, STRIDE = 2, 16, 8, 16, 16, 2

    key = jax.random.PRNGKey(0)
    kx, kw = jax.random.split(key)
    x = jax.random.normal(kx, (N, C_IN, H, W), dtype=jnp.float32)
    weight = jax.random.normal(kw, (C_OUT, C_IN, KH, KW), dtype=jnp.float32) * 0.05
    gamma = jnp.ones((C_OUT,), dtype=jnp.float32)   # BatchNorm2d affine default init
    beta = jnp.zeros((C_OUT,), dtype=jnp.float32)

    out = cnn_block(x, weight, gamma, beta, STRIDE)
    out = jax.block_until_ready(out)

    ref = _reference(x, weight, gamma, beta, STRIDE)
    assert out.shape == ref.shape == (N, C_OUT, H // STRIDE, W // STRIDE), out.shape
    # bf16 MXU inputs (f32 accumulation) vs f32 reference -> loosen tolerance accordingly.
    assert jnp.allclose(out, ref, atol=5e-2, rtol=5e-2), float(jnp.max(jnp.abs(out - ref)))

    print("KERNEL_OK")
</pallas_src>

<mosaic_0001>
module attributes {stable_mosaic.version = 11 : i64} {
  func.func @_conv_stats_kernel(%arg0: i32, %arg1: i32, %arg2: memref<128x256xbf16, #tpu.memory_space<vmem>>, %arg3: memref<256x128xbf16, #tpu.memory_space<vmem>>, %arg4: memref<128x128xf32, #tpu.memory_space<vmem>>, %arg5: memref<1x8x128xf32, #tpu.memory_space<vmem>>) attributes {dimension_semantics = [#tpu.dimension_semantics<parallel>, #tpu.dimension_semantics<arbitrary>], iteration_bounds = array<i64: 1, 1>, scalar_prefetch = 0 : i64, scratch_operands = 0 : i64, tpu.core_type = #tpu.core_type<tc>, window_params = [{transform_indices = @transform_0, window_bounds = array<i64: 128, 256>}, {transform_indices = @transform_1, window_bounds = array<i64: 256, 128>}, {transform_indices = @transform_2, window_bounds = array<i64: 128, 128>}, {transform_indices = @transform_3, window_bounds = array<i64: 1, 8, 128>}]} {
    %c0_i32 = arith.constant 0 : i32
    %0 = arith.cmpi eq, %arg1, %c0_i32 : i32
    %1 = arith.extui %0 : i1 to i32
    %c0_i32_0 = arith.constant 0 : i32
    %2 = arith.cmpi ne, %1, %c0_i32_0 : i32
    scf.if %2 {
      %cst_10 = arith.constant 0.000000e+00 : f32
      %12 = vector.broadcast %cst_10 : f32 to vector<128x128xf32>
      %c0_11 = arith.constant 0 : index
      %c0_12 = arith.constant 0 : index
      %13 = vector.load %arg4[%c0_11, %c0_12] : memref<128x128xf32, #tpu.memory_space<vmem>>, vector<128x128xf32>
      tpu.vector_store %arg4[%c0_11, %c0_12], %12 {strides = array<i32>} : memref<128x128xf32, #tpu.memory_space<vmem>>, vector<128x128xf32>,
    } else {
    }
    %c0 = arith.constant 0 : index
    %c0_1 = arith.constant 0 : index
    %3 = vector.load %arg4[%c0, %c0_1] : memref<128x128xf32, #tpu.memory_space<vmem>>, vector<128x128xf32>
    %c0_2 = arith.constant 0 : index
    %c0_3 = arith.constant 0 : index
    %4 = vector.load %arg2[%c0_2, %c0_3] : memref<128x256xbf16, #tpu.memory_space<vmem>>, vector<128x256xbf16>
    %c0_4 = arith.constant 0 : index
    %c0_5 = arith.constant 0 : index
    %5 = vector.load %arg3[%c0_4, %c0_5] : memref<256x128xbf16, #tpu.memory_space<vmem>>, vector<256x128xbf16>
    %cst = arith.constant dense<0.000000e+00> : vector<128x128xf32>
    %6 = tpu.matmul %4, %5, %cst {dimension_numbers = #tpu.dot_dimension_numbers<[1], [0], [0], [1], [0, 0, 1, 1], [], []>} : vector<128x256xbf16>, vector<256x128xbf16>, vector<128x128xf32> -> vector<128x128xf32>
    %7 = arith.addf %3, %6 : vector<128x128xf32>
    %c0_6 = arith.constant 0 : index
    %c0_7 = arith.constant 0 : index
    %8 = vector.load %arg4[%c0_6, %c0_7] : memref<128x128xf32, #tpu.memory_space<vmem>>, vector<128x128xf32>
    tpu.vector_store %arg4[%c0_6, %c0_7], %7 {strides = array<i32>} : memref<128x128xf32, #tpu.memory_space<vmem>>, vector<128x128xf32>,
    %c0_i32_8 = arith.constant 0 : i32
    %9 = arith.cmpi eq, %arg1, %c0_i32_8 : i32
    %10 = arith.extui %9 : i1 to i32
    %c0_i32_9 = arith.constant 0 : i32
    %11 = arith.cmpi ne, %10, %c0_i32_9 : i32
    scf.if %11 {
      %c0_10 = arith.constant 0 : index
      %c0_11 = arith.constant 0 : index
      %12 = vector.load %arg4[%c0_10, %c0_11] : memref<128x128xf32, #tpu.memory_space<vmem>>, vector<128x128xf32>
      %cst_12 = arith.constant dense<0.000000e+00> : vector<128xf32>
      %13 = vector.multi_reduction <add>, %12, %cst_12 [0] : vector<128x128xf32> to vector<128xf32>
      %14 = vector.shape_cast %13 : vector<128xf32> to vector<1x128xf32>
      %15 = arith.mulf %12, %12 : vector<128x128xf32>
      %cst_13 = arith.constant dense<0.000000e+00> : vector<128xf32>
      %16 = vector.multi_reduction <add>, %15, %cst_13 [0] : vector<128x128xf32> to vector<128xf32>
      %17 = vector.shape_cast %16 : vector<128xf32> to vector<1x128xf32>
      %18 = tpu.iota {dimensions = array<i32: 0>} : vector<8x128xi32>
      %c0_i32_14 = arith.constant 0 : i32
      %19 = vector.broadcast %c0_i32_14 : i32 to vector<8x128xi32>
      %20 = arith.cmpi eq, %18, %19 : vector<8x128xi32>
      %c1_i32 = arith.constant 1 : i32
      %21 = vector.broadcast %c1_i32 : i32 to vector<8x128xi32>
      %22 = arith.cmpi eq, %18, %21 : vector<8x128xi32>
      %cst_15 = arith.constant 0.000000e+00 : f32
      %23 = vector.shape_cast %17 : vector<1x128xf32> to vector<1x128xf32>
      %24 = vector.broadcast %23 : vector<1x128xf32> to vector<8x128xf32>
      %25 = vector.broadcast %cst_15 : f32 to vector<8x128xf32>
      %26 = arith.select %22, %24, %25 : vector<8x128xi1>, vector<8x128xf32>
      %27 = vector.shape_cast %14 : vector<1x128xf32> to vector<1x128xf32>
      %28 = vector.broadcast %27 : vector<1x128xf32> to vector<8x128xf32>
      %29 = arith.select %20, %28, %26 : vector<8x128xi1>, vector<8x128xf32>
      %30 = vector.shape_cast %29 : vector<8x128xf32> to vector<1x8x128xf32>
      %c0_16 = arith.constant 0 : index
      %c0_17 = arith.constant 0 : index
      %c0_18 = arith.constant 0 : index
      %31 = vector.load %arg5[%c0_16, %c0_17, %c0_18] : memref<1x8x128xf32, #tpu.memory_space<vmem>>, vector<1x8x128xf32>
      tpu.vector_store %arg5[%c0_16, %c0_17, %c0_18], %30 {strides = array<i32>} : memref<1x8x128xf32, #tpu.memory_space<vmem>>, vector<1x8x128xf32>,
    } else {
    }
    return
  }
  func.func @transform_0(%arg0: i32, %arg1: i32) -> (i32, i32) {
    %c0_i32 = arith.constant 0 : i32
    return %arg0, %arg1 : i32, i32
  }
  func.func @transform_1(%arg0: i32, %arg1: i32) -> (i32, i32) {
    %c0_i32 = arith.constant 0 : i32
    %c0_i32_0 = arith.constant 0 : i32
    return %arg1, %c0_i32 : i32, i32
  }
  func.func @transform_2(%arg0: i32, %arg1: i32) -> (i32, i32) {
    %c0_i32 = arith.constant 0 : i32
    %c0_i32_0 = arith.constant 0 : i32
    return %arg0, %c0_i32 : i32, i32
  }
  func.func @transform_3(%arg0: i32, %arg1: i32) -> (i32, i32, i32) {
    %c0_i32 = arith.constant 0 : i32
    %c0_i32_0 = arith.constant 0 : i32
    %c0_i32_1 = arith.constant 0 : i32
    return %arg0, %c0_i32, %c0_i32_0 : i32, i32, i32
  }
}

</mosaic_0001>

<llo_original>
// kernel: tpu_custom_call.1
$region0: #{tpu_custom_call.1}
  #allocation0 [shape = 'u32[]', space=smem, size = 0x4, offset = 0x4, fixed_abs, tag = 'smem constant byte address 0x4 - core index']
  #allocation1 [shape = 'u32[144,128]{1,0:T(1,128)}', space=vmem, size = 0x12000, scoped, tag = 'internal scratch']
  %s0 = inlined_call_operand.hbm [shape: bf16[128,256], index: 0, kind: input, shape index: {}]
  %s1 = inlined_call_operand.hbm [shape: bf16[256,128], index: 1, kind: input, shape index: {}]
  %s2 = inlined_call_operand.hbm [shape: f32[128,128], index: 2, kind: output, shape index: {0}]
  %s3 = inlined_call_operand.hbm [shape: f32[1,8,128], index: 3, kind: output, shape index: {1}]
  %4 = xla_tuple %s2, %s3
  %s5 = sld [smem:[#allocation0]]
  $region42: #{tpu_custom_call.1} parent=0
    _
  %s7 = ssub.s32 1, %s5
  %s8 = scalar_select 0, %s7, %s5
  $region1: #{tpu_custom_call.1} parent=0
    #allocation2 [shape = 'u8[65536]{0}', space=vmem, size = 0x10000, scoped, tag = 'input window, operand 0, single buffered']
    #allocation3 [shape = 's32[1]{0}', space=sflag, size = 0x4, scoped, tag = 'scoped memory for tpu_custom_call.1']
    #allocation4 [shape = 's32[1]{0}', space=sflag, size = 0x4, scoped, tag = 'scoped memory for tpu_custom_call.1']
    #allocation5 [shape = 'u8[65536]{0}', space=vmem, size = 0x10000, scoped, tag = 'input window, operand 1, single buffered']
    #allocation6 [shape = 's32[1]{0}', space=sflag, size = 0x4, scoped, tag = 'scoped memory for tpu_custom_call.1']
    #allocation7 [shape = 'u8[65536]{0}', space=vmem, size = 0x10000, scoped, tag = 'output window, operand 0, single buffered']
    #allocation8 [shape = 'u8[4096]{0}', space=vmem, size = 0x1000, scoped, tag = 'output window, operand 1, single buffered']
    #allocation9 [shape = 's32[1]{0}', space=sflag, size = 0x4, scoped, tag = 'scoped memory for tpu_custom_call.1']
    %9 = vsyncpa [#allocation3], 0
    %10 = vsyncpa [#allocation6], 0
    %11 = vsyncpa [#allocation4], 0
    %12 = vsyncpa [#allocation9], 0
    // Predicated region
    $region2: #{tpu_custom_call.1} parent=1 // pred_check
      _
    $region3: #{tpu_custom_call.1} parent=1 // pred_check_branch
      %14 = sbr.rel (0) target = $region5
    $region4: #{tpu_custom_call.1} parent=1 // pred_region
      %s16 = ssub.s32 2048, 2048
      %17 = vsyncadd [#allocation3], %s16
      %s18 = sshll.u32 [#allocation2], 4
      %s19 = int_to_ptr.vmem [resolvable:$true] %s18
      %24 = dma.hbm_to_vmem [thread:$0]  %s0, 2048, %s19, [#allocation3], 128, 128, 8
    $region5: #{tpu_custom_call.1} parent=1 // pred_fallthru
      _
    // Predicated region
    $region6: #{tpu_custom_call.1} parent=1 // pred_check
      _
    $region7: #{tpu_custom_call.1} parent=1 // pred_check_branch
      %26 = sbr.rel (0) target = $region9
    $region8: #{tpu_custom_call.1} parent=1 // pred_region
      %s28 = ssub.s32 2048, 2048
      %29 = vsyncadd [#allocation6], %s28
      %s30 = sshll.u32 [#allocation5], 4
      %s31 = int_to_ptr.vmem [resolvable:$true] %s30
      %36 = dma.hbm_to_vmem [thread:$0]  %s1, 2048, %s31, [#allocation6], 64, 64, 4
    $region9: #{tpu_custom_call.1} parent=1 // pred_fallthru
      _
    // Predicated region
    $region10: #{tpu_custom_call.1} parent=1 // pred_check
      _
    $region11: #{tpu_custom_call.1} parent=1 // pred_check_branch
      %38 = sbr.rel (0) target = $region13
    $region12: #{tpu_custom_call.1} parent=1 // pred_region
      %39 = dma.done [#allocation3], 2048
    $region13: #{tpu_custom_call.1} parent=1 // pred_fallthru
      _
    // Predicated region
    $region14: #{tpu_custom_call.1} parent=1 // pred_check
      _
    $region15: #{tpu_custom_call.1} parent=1 // pred_check_branch
      %41 = sbr.rel (0) target = $region17
    $region16: #{tpu_custom_call.1} parent=1 // pred_region
      %42 = dma.done [#allocation6], 2048
    $region17: #{tpu_custom_call.1} parent=1 // pred_fallthru
      _
    %p44 = scmp.eq.s32.totalorder 0, 0
    // Predicated region
    $region18: #{tpu_custom_call.1} parent=1 // pred_check
      %p45 = pneg %p44
    $region19: #{tpu_custom_call.1} parent=1 // pred_check_branch
      %47 = sbr.rel (%p45) target = $region21
    $region20: #{tpu_custom_call.1} parent=1 // pred_region
      %48 = vst [vmem:[#allocation7] sm:$0xff] 0.0
      %49 = vst [vmem:[#allocation7 + $0x8] sm:$0xff] 0.0
      %50 = vst [vmem:[#allocation7 + $0x10] sm:$0xff] 0.0
      %51 = vst [vmem:[#allocation7 + $0x18] sm:$0xff] 0.0
      %52 = vst [vmem:[#allocation7 + $0x20] sm:$0xff] 0.0
      %53 = vst [vmem:[#allocation7 + $0x28] sm:$0xff] 0.0
      %54 = vst [vmem:[#allocation7 + $0x30] sm:$0xff] 0.0
      %55 = vst [vmem:[#allocation7 + $0x38] sm:$0xff] 0.0
      %56 = vst [vmem:[#allocation7 + $0x40] sm:$0xff] 0.0
      %57 = vst [vmem:[#allocation7 + $0x48] sm:$0xff] 0.0
      %58 = vst [vmem:[#allocation7 + $0x50] sm:$0xff] 0.0
      %59 = vst [vmem:[#allocation7 + $0x58] sm:$0xff] 0.0
      %60 = vst [vmem:[#allocation7 + $0x60] sm:$0xff] 0.0
      %61 = vst [vmem:[#allocation7 + $0x68] sm:$0xff] 0.0
      %62 = vst [vmem:[#allocation7 + $0x70] sm:$0xff] 0.0
      %63 = vst [vmem:[#allocation7 + $0x78] sm:$0xff] 0.0
    $region21: #{tpu_custom_call.1} parent=1 // pred_fallthru
      _
    %v64 = vld [vmem:[#allocation7] sm:$0xff]
    %v65 = vld [vmem:[#allocation7 + $0x8] sm:$0xff]
    %v66 = vld [vmem:[#allocation7 + $0x10] sm:$0xff]
    %v67 = vld [vmem:[#allocation7 + $0x18] sm:$0xff]
    %v68 = vld [vmem:[#allocation7 + $0x20] sm:$0xff]
    %v69 = vld [vmem:[#allocation7 + $0x28] sm:$0xff]
    %v70 = vld [vmem:[#allocation7 + $0x30] sm:$0xff]
    %v71 = vld [vmem:[#allocation7 + $0x38] sm:$0xff]
    %v72 = vld [vmem:[#allocation7 + $0x40] sm:$0xff]
    %v73 = vld [vmem:[#allocation7 + $0x48] sm:$0xff]
    %v74 = vld [vmem:[#allocation7 + $0x50] sm:$0xff]
    %v75 = vld [vmem:[#allocation7 + $0x58] sm:$0xff]
    %v76 = vld [vmem:[#allocation7 + $0x60] sm:$0xff]
    %v77 = vld [vmem:[#allocation7 + $0x68] sm:$0xff]
    %v78 = vld [vmem:[#allocation7 + $0x70] sm:$0xff]
    %v79 = vld [vmem:[#allocation7 + $0x78] sm:$0xff]
    %v80 = vld [vmem:[#allocation2] sm:$0xff]
    %v81 = vld [vmem:[#allocation2 + $0x8] sm:$0xff]
    %v82 = vld [vmem:[#allocation2 + $0x10] sm:$0xff]
    %v83 = vld [vmem:[#allocation2 + $0x18] sm:$0xff]
    %v84 = vld [vmem:[#allocation2 + $0x20] sm:$0xff]
    %v85 = vld [vmem:[#allocation2 + $0x28] sm:$0xff]
    %v86 = vld [vmem:[#allocation2 + $0x30] sm:$0xff]
    %v87 = vld [vmem:[#allocation2 + $0x38] sm:$0xff]
    %v88 = vld [vmem:[#allocation2 + $0x40] sm:$0xff]
    %v89 = vld [vmem:[#allocation2 + $0x48] sm:$0xff]
    %v90 = vld [vmem:[#allocation2 + $0x50] sm:$0xff]
    %v91 = vld [vmem:[#allocation2 + $0x58] sm:$0xff]
    %v92 = vld [vmem:[#allocation2 + $0x60] sm:$0xff]
    %v93 = vld [vmem:[#allocation2 + $0x68] sm:$0xff]
    %v94 = vld [vmem:[#allocation2 + $0x70] sm:$0xff]
    %v95 = vld [vmem:[#allocation2 + $0x78] sm:$0xff]
    %v96 = vld [vmem:[#allocation5] sm:$0xf]
    %v97 = vld [vmem:[#allocation5 + $0x4] sm:$0xf]
    %v98 = vld [vmem:[#allocation5 + $0x8] sm:$0xf]
    %v99 = vld [vmem:[#allocation5 + $0xc] sm:$0xf]
    %v100 = vld [vmem:[#allocation5 + $0x10] sm:$0xf]
    %v101 = vld [vmem:[#allocation5 + $0x14] sm:$0xf]
    %v102 = vld [vmem:[#allocation5 + $0x18] sm:$0xf]
    %v103 = vld [vmem:[#allocation5 + $0x1c] sm:$0xf]
    %v104 = vld [vmem:[#allocation5 + $0x20] sm:$0xf]
    %v105 = vld [vmem:[#allocation5 + $0x24] sm:$0xf]
    %v106 = vld [vmem:[#allocation5 + $0x28] sm:$0xf]
    %v107 = vld [vmem:[#allocation5 + $0x2c] sm:$0xf]
    %v108 = vld [vmem:[#allocation5 + $0x30] sm:$0xf]
    %v109 = vld [vmem:[#allocation5 + $0x34] sm:$0xf]
    %v110 = vld [vmem:[#allocation5 + $0x38] sm:$0xf]
    %v111 = vld [vmem:[#allocation5 + $0x3c] sm:$0xf]
    %v112 = vld [vmem:[#allocation5 + $0x40] sm:$0xf]
    %v113 = vld [vmem:[#allocation5 + $0x44] sm:$0xf]
    %v114 = vld [vmem:[#allocation5 + $0x48] sm:$0xf]
    %v115 = vld [vmem:[#allocation5 + $0x4c] sm:$0xf]
    %v116 = vld [vmem:[#allocation5 + $0x50] sm:$0xf]
    %v117 = vld [vmem:[#allocation5 + $0x54] sm:$0xf]
    %v118 = vld [vmem:[#allocation5 + $0x58] sm:$0xf]
    %v119 = vld [vmem:[#allocation5 + $0x5c] sm:$0xf]
    %v120 = vld [vmem:[#allocation5 + $0x60] sm:$0xf]
    %v121 = vld [vmem:[#allocation5 + $0x64] sm:$0xf]
    %v122 = vld [vmem:[#allocation5 + $0x68] sm:$0xf]
    %v123 = vld [vmem:[#allocation5 + $0x6c] sm:$0xf]
    %v124 = vld [vmem:[#allocation5 + $0x70] sm:$0xf]
    %v125 = vld [vmem:[#allocation5 + $0x74] sm:$0xf]
    %v126 = vld [vmem:[#allocation5 + $0x78] sm:$0xf]
    %v127 = vld [vmem:[#allocation5 + $0x7c] sm:$0xf]
    %v144 = vunpack.c.l.b16 %v80
    %v145 = vunpack.c.h.b16 %v80
    %v146 = vunpack.c.l.b16 %v81
    %v147 = vunpack.c.h.b16 %v81
    %v148 = vunpack.c.l.b16 %v82
    %v149 = vunpack.c.h.b16 %v82
    %v150 = vunpack.c.l.b16 %v83
    %v151 = vunpack.c.h.b16 %v83
    %v152 = vunpack.c.l.b16 %v84
    %v153 = vunpack.c.h.b16 %v84
    %v154 = vunpack.c.l.b16 %v85
    %v155 = vunpack.c.h.b16 %v85
    %v156 = vunpack.c.l.b16 %v86
    %v157 = vunpack.c.h.b16 %v86
    %v158 = vunpack.c.l.b16 %v87
    %v159 = vunpack.c.h.b16 %v87
    %v160 = vunpack.c.l.b16 %v88
    %v161 = vunpack.c.h.b16 %v88
    %v162 = vunpack.c.l.b16 %v89
    %v163 = vunpack.c.h.b16 %v89
    %v164 = vunpack.c.l.b16 %v90
    %v165 = vunpack.c.h.b16 %v90
    %v166 = vunpack.c.l.b16 %v91
    %v167 = vunpack.c.h.b16 %v91
    %v168 = vunpack.c.l.b16 %v92
    %v169 = vunpack.c.h.b16 %v92
    %v170 = vunpack.c.l.b16 %v93
    %v171 = vunpack.c.h.b16 %v93
    %v172 = vunpack.c.l.b16 %v94
    %v173 = vunpack.c.h.b16 %v94
    %v174 = vunpack.c.l.b16 %v95
    %v175 = vunpack.c.h.b16 %v95
    %v176 = vpack.c.b16 %v146, %v144
    %v177 = vpack.c.b16 %v147, %v145
    %v178 = vpack.c.b16 %v150, %v148
    %v179 = vpack.c.b16 %v151, %v149
    %v180 = vpack.c.b16 %v154, %v152
    %v181 = vpack.c.b16 %v155, %v153
    %v182 = vpack.c.b16 %v158, %v156
    %v183 = vpack.c.b16 %v159, %v157
    %v184 = vpack.c.b16 %v162, %v160
    %v185 = vpack.c.b16 %v163, %v161
    %v186 = vpack.c.b16 %v166, %v164
    %v187 = vpack.c.b16 %v167, %v165
    %v188 = vpack.c.b16 %v170, %v168
    %v189 = vpack.c.b16 %v171, %v169
    %v190 = vpack.c.b16 %v174, %v172
    %v191 = vpack.c.b16 %v175, %v173
    %v240 = vunpack.c.l.b16 %v96
    %v241 = vunpack.c.l.b16 %v97
    %v242 = vunpack.c.l.b16 %v98
    %v243 = vunpack.c.l.b16 %v99
    %v244 = vunpack.c.l.b16 %v100
    %v245 = vunpack.c.l.b16 %v101
    %v246 = vunpack.c.l.b16 %v102
    %v247 = vunpack.c.l.b16 %v103
    %v248 = vunpack.c.l.b16 %v104
    %v249 = vunpack.c.l.b16 %v105
    %v250 = vunpack.c.l.b16 %v106
    %v251 = vunpack.c.l.b16 %v107
    %v252 = vunpack.c.l.b16 %v108
    %v253 = vunpack.c.l.b16 %v109
    %v254 = vunpack.c.l.b16 %v110
    %v255 = vunpack.c.l.b16 %v111
    %v256 = vunpack.c.l.b16 %v112
    %v257 = vunpack.c.l.b16 %v113
    %v258 = vunpack.c.l.b16 %v114
    %v259 = vunpack.c.l.b16 %v115
    %v260 = vunpack.c.l.b16 %v116
    %v261 = vunpack.c.l.b16 %v117
    %v262 = vunpack.c.l.b16 %v118
    %v263 = vunpack.c.l.b16 %v119
    %v264 = vunpack.c.l.b16 %v120
    %v265 = vunpack.c.l.b16 %v121
    %v266 = vunpack.c.l.b16 %v122
    %v267 = vunpack.c.l.b16 %v123
    %v268 = vunpack.c.l.b16 %v124
    %v269 = vunpack.c.l.b16 %v125
    %v270 = vunpack.c.l.b16 %v126
    %v271 = vunpack.c.l.b16 %v127
    %v272 = vpack.c.b16 %v241, %v240
    %v273 = vpack.c.b16 %v243, %v242
    %v274 = vpack.c.b16 %v245, %v244
    %v275 = vpack.c.b16 %v247, %v246
    %v276 = vpack.c.b16 %v249, %v248
    %v277 = vpack.c.b16 %v251, %v250
    %v278 = vpack.c.b16 %v253, %v252
    %v279 = vpack.c.b16 %v255, %v254
    %v280 = vpack.c.b16 %v257, %v256
    %v281 = vpack.c.b16 %v259, %v258
    %v282 = vpack.c.b16 %v261, %v260
    %v283 = vpack.c.b16 %v263, %v262
    %v284 = vpack.c.b16 %v265, %v264
    %v285 = vpack.c.b16 %v267, %v266
    %v286 = vpack.c.b16 %v269, %v268
    %v287 = vpack.c.b16 %v271, %v270
    %304 = vmatprep.subr.bf16.mxu0 0
    %305 = vmatpush1.bf16.msra.mxu0 %v272
    %306 = vmatprep.subr.bf16.mxu0 0
    %307 = vmatpush1.bf16.msra.mxu0 %v273
    %308 = vmatprep.subr.bf16.mxu0 0
    %309 = vmatpush1.bf16.msra.mxu0 %v274
    %310 = vmatprep.subr.bf16.mxu0 0
    %311 = vmatpush1.bf16.msra.mxu0 %v275
    %312 = vmatprep.subr.bf16.mxu0 0
    %313 = vmatpush1.bf16.msra.mxu0 %v276
    %314 = vmatprep.subr.bf16.mxu0 0
    %315 = vmatpush1.bf16.msra.mxu0 %v277
    %316 = vmatprep.subr.bf16.mxu0 0
    %317 = vmatpush1.bf16.msra.mxu0 %v278
    %318 = vmatprep.subr.bf16.mxu0 0
    %319 = vmatpush1.bf16.msra.mxu0 %v279
    %320 = vmatprep.subr.bf16.mxu0 0
    %321 = vmatpush1.bf16.msra.mxu0 %v280
    %322 = vmatprep.subr.bf16.mxu0 0
    %323 = vmatpush1.bf16.msra.mxu0 %v281
    %324 = vmatprep.subr.bf16.mxu0 0
    %325 = vmatpush1.bf16.msra.mxu0 %v282
    %326 = vmatprep.subr.bf16.mxu0 0
    %327 = vmatpush1.bf16.msra.mxu0 %v283
    %328 = vmatprep.subr.bf16.mxu0 0
    %329 = vmatpush1.bf16.msra.mxu0 %v284
    %330 = vmatprep.subr.bf16.mxu0 0
    %331 = vmatpush1.bf16.msra.mxu0 %v285
    %332 = vmatprep.subr.bf16.mxu0 0
    %333 = vmatpush1.bf16.msra.mxu0 %v286
    %334 = vmatprep.subr.bf16.mxu0 0
    %335 = vmatpush1.bf16.msra.mxu0 %v287
    %336 = vmatprep.mubr.bf16.mxu0 %v177
    %337 = vmatmul.mubr.bf16.gmra.mrb[0].mxu0 %v176
    %v338 = vpop.f32.mrb[0].mxu0
    %v339 = vadd.f32 0.0, %v338
    %v340 = vpop.f32.mrb[0].mxu0
    %v341 = vpop.f32.mrb[0].mxu0
    %v342 = vadd.f32 0.0, %v341
    %v343 = vpop.f32.mrb[0].mxu0
    %344 = vmatprep.mubr.bf16.mxu0 %v179
    %345 = vmatmul.mubr.bf16.gmra.mrb[0].mxu0 %v178
    %v346 = vpop.f32.mrb[0].mxu0
    %v347 = vadd.f32 0.0, %v346
    %v348 = vpop.f32.mrb[0].mxu0
    %v349 = vpop.f32.mrb[0].mxu0
    %v350 = vadd.f32 0.0, %v349
    %v351 = vpop.f32.mrb[0].mxu0
    %352 = vmatprep.mubr.bf16.mxu0 %v181
    %353 = vmatmul.mubr.bf16.gmra.mrb[0].mxu0 %v180
    %v354 = vpop.f32.mrb[0].mxu0
    %v355 = vadd.f32 0.0, %v354
    %v356 = vpop.f32.mrb[0].mxu0
    %v357 = vpop.f32.mrb[0].mxu0
    %v358 = vadd.f32 0.0, %v357
    %v359 = vpop.f32.mrb[0].mxu0
    %360 = vmatprep.mubr.bf16.mxu0 %v183
    %361 = vmatmul.mubr.bf16.gmra.mrb[0].mxu0 %v182
    %v362 = vpop.f32.mrb[0].mxu0
    %v363 = vadd.f32 0.0, %v362
    %v364 = vpop.f32.mrb[0].mxu0
    %v365 = vpop.f32.mrb[0].mxu0
    %v366 = vadd.f32 0.0, %v365
    %v367 = vpop.f32.mrb[0].mxu0
    %368 = vmatprep.mubr.bf16.mxu0 %v185
    %369 = vmatmul.mubr.bf16.gmra.mrb[0].mxu0 %v184
    %v370 = vpop.f32.mrb[0].mxu0
    %v371 = vadd.f32 0.0, %v370
    %v372 = vpop.f32.mrb[0].mxu0
    %v373 = vpop.f32.mrb[0].mxu0
    %v374 = vadd.f32 0.0, %v373
    %v375 = vpop.f32.mrb[0].mxu0
    %376 = vmatprep.mubr.bf16.mxu0 %v187
    %377 = vmatmul.mubr.bf16.gmra.mrb[0].mxu0 %v186
    %v378 = vpop.f32.mrb[0].mxu0
    %v379 = vadd.f32 0.0, %v378
    %v380 = vpop.f32.mrb[0].mxu0
    %v381 = vpop.f32.mrb[0].mxu0
    %v382 = vadd.f32 0.0, %v381
    %v383 = vpop.f32.mrb[0].mxu0
    %384 = vmatprep.mubr.bf16.mxu0 %v189
    %385 = vmatmul.mubr.bf16.gmra.mrb[0].mxu0 %v188
    %v386 = vpop.f32.mrb[0].mxu0
    %v387 = vadd.f32 0.0, %v386
    %v388 = vpop.f32.mrb[0].mxu0
    %v389 = vpop.f32.mrb[0].mxu0
    %v390 = vadd.f32 0.0, %v389
    %v391 = vpop.f32.mrb[0].mxu0
    %392 = vmatprep.mubr.bf16.mxu0 %v191
    %393 = vmatmul.mubr.bf16.gmra.mrb[0].mxu0 %v190
    %v394 = vpop.f32.mrb[0].mxu0
    %v395 = vadd.f32 0.0, %v394
    %v396 = vpop.f32.mrb[0].mxu0
    %v397 = vpop.f32.mrb[0].mxu0
    %v398 = vadd.f32 0.0, %v397
    %v399 = vpop.f32.mrb[0].mxu0
    %400 = vdwg.mxu0
    %v401 = vadd.f32 %v64, %v339
    %v402 = vadd.f32 %v65, %v342
    %v403 = vadd.f32 %v66, %v347
    %v404 = vadd.f32 %v67, %v350
    %v405 = vadd.f32 %v68, %v355
    %v406 = vadd.f32 %v69, %v358
    %v407 = vadd.f32 %v70, %v363
    %v408 = vadd.f32 %v71, %v366
    %v409 = vadd.f32 %v72, %v371
    %v410 = vadd.f32 %v73, %v374
    %v411 = vadd.f32 %v74, %v379
    %v412 = vadd.f32 %v75, %v382
    %v413 = vadd.f32 %v76, %v387
    %v414 = vadd.f32 %v77, %v390
    %v415 = vadd.f32 %v78, %v395
    %v416 = vadd.f32 %v79, %v398
    %417 = vst [vmem:[#allocation7] sm:$0xff] %v401
    %418 = vst [vmem:[#allocation7 + $0x8] sm:$0xff] %v402
    %419 = vst [vmem:[#allocation7 + $0x10] sm:$0xff] %v403
    %420 = vst [vmem:[#allocation7 + $0x18] sm:$0xff] %v404
    %421 = vst [vmem:[#allocation7 + $0x20] sm:$0xff] %v405
    %422 = vst [vmem:[#allocation7 + $0x28] sm:$0xff] %v406
    %423 = vst [vmem:[#allocation7 + $0x30] sm:$0xff] %v407
    %424 = vst [vmem:[#allocation7 + $0x38] sm:$0xff] %v408
    %425 = vst [vmem:[#allocation7 + $0x40] sm:$0xff] %v409
    %426 = vst [vmem:[#allocation7 + $0x48] sm:$0xff] %v410
    %427 = vst [vmem:[#allocation7 + $0x50] sm:$0xff] %v411
    %428 = vst [vmem:[#allocation7 + $0x58] sm:$0xff] %v412
    %429 = vst [vmem:[#allocation7 + $0x60] sm:$0xff] %v413
    %430 = vst [vmem:[#allocation7 + $0x68] sm:$0xff] %v414
    %431 = vst [vmem:[#allocation7 + $0x70] sm:$0xff] %v415
    %432 = vst [vmem:[#allocation7 + $0x78] sm:$0xff] %v416
    // Predicated region
    $region22: #{tpu_custom_call.1} parent=1 // pred_check
      %p433 = pneg %p44
    $region23: #{tpu_custom_call.1} parent=1 // pred_check_branch
      %435 = sbr.rel (%p433) target = $region25
    $region24: #{tpu_custom_call.1} parent=1 // pred_region
      %v436 = vld [vmem:[#allocation7] sm:$0xff]
      %v437 = vld [vmem:[#allocation7 + $0x8] sm:$0xff]
      %v438 = vld [vmem:[#allocation7 + $0x10] sm:$0xff]
      %v439 = vld [vmem:[#allocation7 + $0x18] sm:$0xff]
      %v440 = vld [vmem:[#allocation7 + $0x20] sm:$0xff]
      %v441 = vld [vmem:[#allocation7 + $0x28] sm:$0xff]
      %v442 = vld [vmem:[#allocation7 + $0x30] sm:$0xff]
      %v443 = vld [vmem:[#allocation7 + $0x38] sm:$0xff]
      %v444 = vld [vmem:[#allocation7 + $0x40] sm:$0xff]
      %v445 = vld [vmem:[#allocation7 + $0x48] sm:$0xff]
      %v446 = vld [vmem:[#allocation7 + $0x50] sm:$0xff]
      %v447 = vld [vmem:[#allocation7 + $0x58] sm:$0xff]
      %v448 = vld [vmem:[#allocation7 + $0x60] sm:$0xff]
      %v449 = vld [vmem:[#allocation7 + $0x68] sm:$0xff]
      %v450 = vld [vmem:[#allocation7 + $0x70] sm:$0xff]
      %v451 = vld [vmem:[#allocation7 + $0x78] sm:$0xff]
      %v452 = vadd.f32 %v436, %v437
      %v453 = vadd.f32 %v452, %v438
      %v454 = vadd.f32 %v453, %v439
      %v455 = vadd.f32 %v454, %v440
      %v456 = vadd.f32 %v455, %v441
      %v457 = vadd.f32 %v456, %v442
      %v458 = vadd.f32 %v457, %v443
      %v459 = vadd.f32 %v458, %v444
      %v460 = vadd.f32 %v459, %v445
      %v461 = vadd.f32 %v460, %v446
      %v462 = vadd.f32 %v461, %v447
      %v463 = vadd.f32 %v462, %v448
      %v464 = vadd.f32 %v463, %v449
      %v465 = vadd.f32 %v464, %v450
      %v466 = vadd.f32 %v465, %v451
      %v467 = vrot.slane %v466, 4
      %v468 = vadd.f32 %v466, %v467
      %v469 = vrot.slane %v468, 2
      %v470 = vadd.f32 %v468, %v469
      %v471 = vrot.slane %v470, 1
      %v472 = vadd.f32 %v470, %v471
      %v473 = vmul.f32 %v436, %v436
      %v474 = vmul.f32 %v437, %v437
      %v475 = vmul.f32 %v438, %v438
      %v476 = vmul.f32 %v439, %v439
      %v477 = vmul.f32 %v440, %v440
      %v478 = vmul.f32 %v441, %v441
      %v479 = vmul.f32 %v442, %v442
      %v480 = vmul.f32 %v443, %v443
      %v481 = vmul.f32 %v444, %v444
      %v482 = vmul.f32 %v445, %v445
      %v483 = vmul.f32 %v446, %v446
      %v484 = vmul.f32 %v447, %v447
      %v485 = vmul.f32 %v448, %v448
      %v486 = vmul.f32 %v449, %v449
      %v487 = vmul.f32 %v450, %v450
      %v488 = vmul.f32 %v451, %v451
      %v489 = vadd.f32 %v473, %v474
      %v490 = vadd.f32 %v489, %v475
      %v491 = vadd.f32 %v490, %v476
      %v492 = vadd.f32 %v491, %v477
      %v493 = vadd.f32 %v492, %v478
      %v494 = vadd.f32 %v493, %v479
      %v495 = vadd.f32 %v494, %v480
      %v496 = vadd.f32 %v495, %v481
      %v497 = vadd.f32 %v496, %v482
      %v498 = vadd.f32 %v497, %v483
      %v499 = vadd.f32 %v498, %v484
      %v500 = vadd.f32 %v499, %v485
      %v501 = vadd.f32 %v500, %v486
      %v502 = vadd.f32 %v501, %v487
      %v503 = vadd.f32 %v502, %v488
      %v504 = vrot.slane %v503, 4
      %v505 = vadd.f32 %v503, %v504
      %v506 = vrot.slane %v505, 2
      %v507 = vadd.f32 %v505, %v506
      %v508 = vrot.slane %v507, 1
      %v509 = vadd.f32 %v507, %v508
      %v510 = vlaneseq
      %v511 = vshrl.u32 %v510, 7
      %vm512 = vcmp.eq.s32.totalorder %v511, 0
      %vm513 = vcmp.eq.s32.totalorder %v511, 1
      %v514 = vsel %vm513, %v509, 0.0
      %v515 = vsel %vm512, %v472, %v514
      %516 = vst [vmem:[#allocation8] sm:$0xff] %v515
    $region25: #{tpu_custom_call.1} parent=1 // pred_fallthru
      _
    // Predicated region
    $region26: #{tpu_custom_call.1} parent=1 // pred_check
      _
    $region27: #{tpu_custom_call.1} parent=1 // pred_check_branch
      %518 = sbr.rel (0) target = $region29
    $region28: #{tpu_custom_call.1} parent=1 // pred_region
      %s520 = ssub.s32 2048, 2048
      %521 = vsyncadd [#allocation4], %s520
      %s522 = sshll.u32 [#allocation7], 4
      %s523 = int_to_ptr.vmem [resolvable:$true] %s522
      %528 = dma.vmem_to_hbm [thread:$0]  %s523, 2048, %s2, [#allocation4], 128, 128, 8
    $region29: #{tpu_custom_call.1} parent=1 // pred_fallthru
      _
    // Predicated region
    $region30: #{tpu_custom_call.1} parent=1 // pred_check
      _
    $region31: #{tpu_custom_call.1} parent=1 // pred_check_branch
      %530 = sbr.rel (0) target = $region33
    $region32: #{tpu_custom_call.1} parent=1 // pred_region
      %s532 = ssub.s32 128, 128
      %533 = vsyncadd [#allocation9], %s532
      %s535 = sshll.u32 [#allocation8], 4
      %s536 = int_to_ptr.vmem [resolvable:$true] %s535
      %538 = dma.vmem_to_hbm [thread:$0]  %s536, 128, %s3, [#allocation9]
    $region33: #{tpu_custom_call.1} parent=1 // pred_fallthru
      _
    // Predicated region
    $region34: #{tpu_custom_call.1} parent=1 // pred_check
      _
    $region35: #{tpu_custom_call.1} parent=1 // pred_check_branch
      %540 = sbr.rel (0) target = $region37
    $region36: #{tpu_custom_call.1} parent=1 // pred_region
      %541 = dma.done [#allocation4], 2048
    $region37: #{tpu_custom_call.1} parent=1 // pred_fallthru
      _
    // Predicated region
    $region38: #{tpu_custom_call.1} parent=1 // pred_check
      _
    $region39: #{tpu_custom_call.1} parent=1 // pred_check_branch
      %543 = sbr.rel (0) target = $region41
    $region40: #{tpu_custom_call.1} parent=1 // pred_region
      %544 = dma.done [#allocation9], 128
    $region41: #{tpu_custom_call.1} parent=1 // pred_fallthru
      _
    %545 = vsyncpa [#allocation3], 1
    %546 = vsyncpa [#allocation6], 1
    %547 = vsyncpa [#allocation4], 1
    %548 = vsyncpa [#allocation9], 1

</llo_original>
